<compile_context>
chip_gen: v7x
topology: tpu7x:2x2x1
jax: 0.10.0
libtpu: 0.0.40
codegen_flags: <defaults>
</compile_context>

<pallas_src>
import functools

import jax
import jax.numpy as jnp
from jax.experimental import pallas as pl
from jax.experimental.pallas import tpu as pltpu


def _round_up(n, m):
    return ((n + m - 1) // m) * m


def _swish_f32(h, *, approx):
    # swish(h) = h * sigmoid(h), sigmoid via exp + reciprocal so both
    # transcendentals issue on the otherwise-idle EUP slot.
    # Numerically stable: never exponentiate a positive argument.
    e = jnp.exp(-jnp.abs(h))                          # EUP
    r = pl.reciprocal(1.0 + e, approx=approx)         # EUP
    sig = jnp.where(h >= 0, r, e * r)                 # VPU select
    return h * sig


def _residual_kernel(x_ref, w1_ref, b1_ref, w2_ref, b2_ref, o_ref, *,
                     approx_sigmoid):
    mxu_dt = w1_ref.dtype

    # lin1 + swish (MXU in mxu_dt, f32 accumulation, bias/activation in f32)
    h = jnp.dot(x_ref[...].astype(mxu_dt), w1_ref[...],
                preferred_element_type=jnp.float32)
    h = _swish_f32(h + b1_ref[...], approx=approx_sigmoid)

    # lin2 + swish
    h = jnp.dot(h.astype(mxu_dt), w2_ref[...],
                preferred_element_type=jnp.float32)
    h = _swish_f32(h + b2_ref[...], approx=approx_sigmoid)

    # residual: re-read x from VMEM so the f32 copy is not held in vregs
    # across both matmuls (avoids spills at large tm).
    o_ref[...] = (x_ref[...].astype(jnp.float32) + h).astype(o_ref.dtype)


@functools.partial(jax.jit, static_argnames=("tm", "mxu_dtype"))
def residual_layer(x, w1, b1, w2, b2, *, tm=256, mxu_dtype=jnp.bfloat16):
    """x: (N, H); w1, w2: (H, H) PyTorch Linear weights (out, in); b1, b2: (H,)."""
    N, H = x.shape
    H_pad = _round_up(H, 128)                            # lane-dense feature dim
    tm = max(8, min(_round_up(tm, 8), _round_up(N, 8)))  # row tile, sublane aligned
    grid = (pl.cdiv(N, tm),)                             # ragged tail masked by Pallas

    # Pre-transpose weights (x @ W^T == x @ w_t), cast MXU operands, zero-pad
    # the feature dim. Zero padding is exact: padded columns stay 0 through the
    # zero bias pad, swish(0)=0, and the zero-padded residual input.
    def pad2(a):
        return jnp.pad(a, ((0, H_pad - a.shape[0]), (0, H_pad - a.shape[1])))

    w1_t = pad2(w1.T).astype(mxu_dtype)
    w2_t = pad2(w2.T).astype(mxu_dtype)
    b1_r = jnp.pad(b1, (0, H_pad - H)).astype(jnp.float32).reshape(1, H_pad)
    b2_r = jnp.pad(b2, (0, H_pad - H)).astype(jnp.float32).reshape(1, H_pad)
    x_p = jnp.pad(x, ((0, 0), (0, H_pad - H))) if H_pad != H else x

    # VMEM budget: 2 resident (double-buffered) weight blocks + pipelined
    # x/out row tiles + biases. Clamp to v7x's 64 MiB physical VMEM; floor at
    # 32 MiB so v5e's 16 MiB default scoped limit never pins the tile size.
    itm = jnp.dtype(mxu_dtype).itemsize
    est = (2 * 2 * H_pad * H_pad * itm
           + 2 * 2 * tm * H_pad * x.dtype.itemsize
           + 2 * H_pad * 4)
    vmem_limit = int(min(max(2 * est, 32 * 1024 * 1024), 64 * 1024 * 1024))

    kernel = functools.partial(
        _residual_kernel, approx_sigmoid=(mxu_dtype == jnp.bfloat16))

    out = pl.pallas_call(
        kernel,
        out_shape=jax.ShapeDtypeStruct((N, H_pad), x.dtype),
        grid_spec=pltpu.PrefetchScalarGridSpec(
            num_scalar_prefetch=0,
            grid=grid,
            in_specs=[
                pl.BlockSpec((tm, H_pad), lambda i: (i, 0)),      # x row tile
                pl.BlockSpec((H_pad, H_pad), lambda i: (0, 0)),   # w1^T (resident)
                pl.BlockSpec((1, H_pad), lambda i: (0, 0)),       # b1
                pl.BlockSpec((H_pad, H_pad), lambda i: (0, 0)),   # w2^T (resident)
                pl.BlockSpec((1, H_pad), lambda i: (0, 0)),       # b2
            ],
            out_specs=pl.BlockSpec((tm, H_pad), lambda i: (i, 0)),
        ),
        compiler_params=pltpu.CompilerParams(
            # row axis is independent -> shardable across the 2 TCs on v7x
            dimension_semantics=("parallel",),
            vmem_limit_bytes=vmem_limit,
        ),
    )(x_p, w1_t, b1_r, w2_t, b2_r)

    return out[:, :H] if H_pad != H else out


def glorot_orthogonal(key, shape, scale=2.0, dtype=jnp.float32):
    """Deterministic glorot_orthogonal init: orthogonal matrix rescaled so that
    Var(W) = scale / ((fan_in + fan_out) / 2), matching torch_geometric's init."""
    out_f, in_f = shape
    a = jax.random.normal(key, (max(shape), max(shape)), dtype=jnp.float32)
    q, _ = jnp.linalg.qr(a)
    w = q[:out_f, :in_f]
    var = jnp.var(w)
    target_var = scale / ((in_f + out_f) / 2.0)
    w = w * jnp.sqrt(target_var / (var + 1e-12))
    return w.astype(dtype)


def residual_layer_ref(x, w1, b1, w2, b2):
    def swish(z):
        return z * jax.nn.sigmoid(z)
    h = swish(x @ w1.T + b1)
    h = swish(h @ w2.T + b2)
    return x + h


if __name__ == "__main__":
    N, H = 16, 32  # small shapes: 16 rows, hidden_channels=32

    key = jax.random.PRNGKey(0)
    kx, k1, k2 = jax.random.split(key, 3)

    x = jax.random.normal(kx, (N, H), dtype=jnp.float32)
    w1 = glorot_orthogonal(k1, (H, H), scale=2.0)
    b1 = jnp.zeros((H,), dtype=jnp.float32)
    w2 = glorot_orthogonal(k2, (H, H), scale=2.0)
    b2 = jnp.zeros((H,), dtype=jnp.float32)

    ref = residual_layer_ref(x, w1, b1, w2, b2)

    # f32 MXU path (exact reciprocal) — tight tolerance.
    out_f32 = jax.block_until_ready(
        residual_layer(x, w1, b1, w2, b2, mxu_dtype=jnp.float32))
    assert out_f32.shape == (N, H)
    assert jnp.allclose(out_f32, ref, atol=1e-4, rtol=1e-4), "f32 mismatch vs reference"

    # bf16 MXU path (default perf config) — relaxed tolerance.
    out_bf16 = jax.block_until_ready(residual_layer(x, w1, b1, w2, b2))
    assert out_bf16.shape == (N, H)
    assert jnp.allclose(out_bf16, ref, atol=3e-2, rtol=3e-2), "bf16 mismatch vs reference"

    # Ragged row count exercises the cdiv grid / masked tail path.
    out_ragged = jax.block_until_ready(
        residual_layer(x[:13], w1, b1, w2, b2, mxu_dtype=jnp.float32))
    assert out_ragged.shape == (13, H)
    assert jnp.allclose(out_ragged, ref[:13], atol=1e-4, rtol=1e-4), "ragged mismatch"

    print("KERNEL_OK")
</pallas_src>

<mosaic_0001>
module attributes {stable_mosaic.version = 11 : i64} {
  func.func @_residual_kernel(%arg0: i32, %arg1: memref<16x128xf32, #tpu.memory_space<vmem>>, %arg2: memref<128x128xf32, #tpu.memory_space<vmem>>, %arg3: memref<1x128xf32, #tpu.memory_space<vmem>>, %arg4: memref<128x128xf32, #tpu.memory_space<vmem>>, %arg5: memref<1x128xf32, #tpu.memory_space<vmem>>, %arg6: memref<16x128xf32, #tpu.memory_space<vmem>>) attributes {dimension_semantics = [#tpu.dimension_semantics<parallel>], iteration_bounds = array<i64: 1>, scalar_prefetch = 0 : i64, scratch_operands = 0 : i64, tpu.core_type = #tpu.core_type<tc>, window_params = [{transform_indices = @transform_0, window_bounds = array<i64: 16, 128>}, {pipeline_mode = #tpu.pipeline_mode<synchronous>, transform_indices = @transform_1, window_bounds = array<i64: 128, 128>}, {pipeline_mode = #tpu.pipeline_mode<synchronous>, transform_indices = @transform_2, window_bounds = array<i64: 1, 128>}, {pipeline_mode = #tpu.pipeline_mode<synchronous>, transform_indices = @transform_3, window_bounds = array<i64: 128, 128>}, {pipeline_mode = #tpu.pipeline_mode<synchronous>, transform_indices = @transform_4, window_bounds = array<i64: 1, 128>}, {transform_indices = @transform_5, window_bounds = array<i64: 16, 128>}]} {
    %c0 = arith.constant 0 : index
    %c0_0 = arith.constant 0 : index
    %0 = vector.load %arg1[%c0, %c0_0] : memref<16x128xf32, #tpu.memory_space<vmem>>, vector<16x128xf32>
    %c0_1 = arith.constant 0 : index
    %c0_2 = arith.constant 0 : index
    %1 = vector.load %arg2[%c0_1, %c0_2] : memref<128x128xf32, #tpu.memory_space<vmem>>, vector<128x128xf32>
    %cst = arith.constant dense<0.000000e+00> : vector<16x128xf32>
    %2 = tpu.matmul %0, %1, %cst {dimension_numbers = #tpu.dot_dimension_numbers<[1], [0], [0], [1], [0, 0, 1, 1], [], []>} : vector<16x128xf32>, vector<128x128xf32>, vector<16x128xf32> -> vector<16x128xf32>
    %c0_3 = arith.constant 0 : index
    %c0_4 = arith.constant 0 : index
    %3 = vector.load %arg3[%c0_3, %c0_4] : memref<1x128xf32, #tpu.memory_space<vmem>>, vector<1x128xf32>
    %4 = vector.broadcast %3 : vector<1x128xf32> to vector<16x128xf32>
    %5 = arith.addf %2, %4 : vector<16x128xf32>
    %6 = math.absf %5 : vector<16x128xf32>
    %cst_5 = arith.constant 0.000000e+00 : f32
    %7 = vector.broadcast %cst_5 : f32 to vector<16x128xf32>
    %8 = arith.subf %7, %6 : vector<16x128xf32>
    %9 = math.exp %8 : vector<16x128xf32>
    %cst_6 = arith.constant 1.000000e+00 : f32
    %10 = vector.broadcast %cst_6 : f32 to vector<16x128xf32>
    %11 = arith.addf %10, %9 : vector<16x128xf32>
    %12 = tpu.reciprocal %11 : vector<16x128xf32> -> vector<16x128xf32>
    %cst_7 = arith.constant 0.000000e+00 : f32
    %13 = vector.broadcast %cst_7 : f32 to vector<16x128xf32>
    %14 = arith.cmpf oge, %5, %13 : vector<16x128xf32>
    %15 = arith.mulf %9, %12 : vector<16x128xf32>
    %16 = arith.select %14, %12, %15 : vector<16x128xi1>, vector<16x128xf32>
    %17 = arith.mulf %5, %16 : vector<16x128xf32>
    %c0_8 = arith.constant 0 : index
    %c0_9 = arith.constant 0 : index
    %18 = vector.load %arg4[%c0_8, %c0_9] : memref<128x128xf32, #tpu.memory_space<vmem>>, vector<128x128xf32>
    %cst_10 = arith.constant dense<0.000000e+00> : vector<16x128xf32>
    %19 = tpu.matmul %17, %18, %cst_10 {dimension_numbers = #tpu.dot_dimension_numbers<[1], [0], [0], [1], [0, 0, 1, 1], [], []>} : vector<16x128xf32>, vector<128x128xf32>, vector<16x128xf32> -> vector<16x128xf32>
    %c0_11 = arith.constant 0 : index
    %c0_12 = arith.constant 0 : index
    %20 = vector.load %arg5[%c0_11, %c0_12] : memref<1x128xf32, #tpu.memory_space<vmem>>, vector<1x128xf32>
    %21 = vector.broadcast %20 : vector<1x128xf32> to vector<16x128xf32>
    %22 = arith.addf %19, %21 : vector<16x128xf32>
    %23 = math.absf %22 : vector<16x128xf32>
    %cst_13 = arith.constant 0.000000e+00 : f32
    %24 = vector.broadcast %cst_13 : f32 to vector<16x128xf32>
    %25 = arith.subf %24, %23 : vector<16x128xf32>
    %26 = math.exp %25 : vector<16x128xf32>
    %cst_14 = arith.constant 1.000000e+00 : f32
    %27 = vector.broadcast %cst_14 : f32 to vector<16x128xf32>
    %28 = arith.addf %27, %26 : vector<16x128xf32>
    %29 = tpu.reciprocal %28 : vector<16x128xf32> -> vector<16x128xf32>
    %cst_15 = arith.constant 0.000000e+00 : f32
    %30 = vector.broadcast %cst_15 : f32 to vector<16x128xf32>
    %31 = arith.cmpf oge, %22, %30 : vector<16x128xf32>
    %32 = arith.mulf %26, %29 : vector<16x128xf32>
    %33 = arith.select %31, %29, %32 : vector<16x128xi1>, vector<16x128xf32>
    %34 = arith.mulf %22, %33 : vector<16x128xf32>
    %c0_16 = arith.constant 0 : index
    %c0_17 = arith.constant 0 : index
    %35 = vector.load %arg1[%c0_16, %c0_17] : memref<16x128xf32, #tpu.memory_space<vmem>>, vector<16x128xf32>
    %36 = arith.addf %35, %34 : vector<16x128xf32>
    %c0_18 = arith.constant 0 : index
    %c0_19 = arith.constant 0 : index
    %37 = vector.load %arg6[%c0_18, %c0_19] : memref<16x128xf32, #tpu.memory_space<vmem>>, vector<16x128xf32>
    tpu.vector_store %arg6[%c0_18, %c0_19], %36 {strides = array<i32>} : memref<16x128xf32, #tpu.memory_space<vmem>>, vector<16x128xf32>,
    return
  }
  func.func @transform_0(%arg0: i32) -> (i32, i32) {
    %c0_i32 = arith.constant 0 : i32
    %c0_i32_0 = arith.constant 0 : i32
    return %arg0, %c0_i32 : i32, i32
  }
  func.func @transform_1(%arg0: i32) -> (i32, i32) {
    %c0_i32 = arith.constant 0 : i32
    %c0_i32_0 = arith.constant 0 : i32
    %c0_i32_1 = arith.constant 0 : i32
    return %c0_i32, %c0_i32_0 : i32, i32
  }
  func.func @transform_2(%arg0: i32) -> (i32, i32) {
    %c0_i32 = arith.constant 0 : i32
    %c0_i32_0 = arith.constant 0 : i32
    %c0_i32_1 = arith.constant 0 : i32
    return %c0_i32, %c0_i32_0 : i32, i32
  }
  func.func @transform_3(%arg0: i32) -> (i32, i32) {
    %c0_i32 = arith.constant 0 : i32
    %c0_i32_0 = arith.constant 0 : i32
    %c0_i32_1 = arith.constant 0 : i32
    return %c0_i32, %c0_i32_0 : i32, i32
  }
  func.func @transform_4(%arg0: i32) -> (i32, i32) {
    %c0_i32 = arith.constant 0 : i32
    %c0_i32_0 = arith.constant 0 : i32
    %c0_i32_1 = arith.constant 0 : i32
    return %c0_i32, %c0_i32_0 : i32, i32
  }
  func.func @transform_5(%arg0: i32) -> (i32, i32) {
    %c0_i32 = arith.constant 0 : i32
    %c0_i32_0 = arith.constant 0 : i32
    return %arg0, %c0_i32 : i32, i32
  }
}

</mosaic_0001>

<llo_original>
// kernel: residual_layer.1
$region0: #{residual_layer.1}
  #allocation0 [shape = 'u32[]', space=smem, size = 0x4, offset = 0x4, fixed_abs, tag = 'smem constant byte address 0x4 - core index']
  #allocation1 [shape = 'u32[144,128]{1,0:T(1,128)}', space=vmem, size = 0x12000, scoped, tag = 'internal scratch']
  %s0 = inlined_call_operand.vmem [shape: f32[16,128], index: 0, kind: input, shape index: {}]
  %s1 = inlined_call_operand.vmem [shape: f32[128,128], index: 1, kind: input, shape index: {}]
  %s2 = inlined_call_operand.vmem [shape: f32[1,128], index: 2, kind: input, shape index: {}]
  %s3 = inlined_call_operand.vmem [shape: f32[128,128], index: 3, kind: input, shape index: {}]
  %s4 = inlined_call_operand.vmem [shape: f32[1,128], index: 4, kind: input, shape index: {}]
  %s5 = inlined_call_operand.hbm [shape: f32[16,128], index: 5, kind: output, shape index: {}]
  %s6 = sld [smem:[#allocation0]]
  $region30: #{residual_layer.1} parent=0
    _
  %s8 = ssub.s32 1, %s6
  %s9 = scalar_select 0, %s8, %s6
  $region1: #{residual_layer.1} parent=0
    #allocation2 [shape = 'u8[8192]{0}', space=vmem, size = 0x2000, scoped, tag = 'output window, operand 0, single buffered']
    #allocation3 [shape = 's32[1]{0}', space=sflag, size = 0x4, scoped, tag = 'scoped memory for residual_layer.1']
    %10 = vsyncpa [#allocation3], 0
    // Predicated region
    $region2: #{residual_layer.1} parent=1 // pred_check
      _
    $region3: #{residual_layer.1} parent=1 // pred_check_branch
      %12 = sbr.rel (0) target = $region5
    $region4: #{residual_layer.1} parent=1 // pred_region
      _
    $region5: #{residual_layer.1} parent=1 // pred_fallthru
      _
    // Predicated region
    $region6: #{residual_layer.1} parent=1 // pred_check
      _
    $region7: #{residual_layer.1} parent=1 // pred_check_branch
      %14 = sbr.rel (0) target = $region9
    $region8: #{residual_layer.1} parent=1 // pred_region
      _
    $region9: #{residual_layer.1} parent=1 // pred_fallthru
      _
    // Predicated region
    $region10: #{residual_layer.1} parent=1 // pred_check
      _
    $region11: #{residual_layer.1} parent=1 // pred_check_branch
      %16 = sbr.rel (0) target = $region13
    $region12: #{residual_layer.1} parent=1 // pred_region
      _
    $region13: #{residual_layer.1} parent=1 // pred_fallthru
      _
    // Predicated region
    $region14: #{residual_layer.1} parent=1 // pred_check
      _
    $region15: #{residual_layer.1} parent=1 // pred_check_branch
      %18 = sbr.rel (0) target = $region17
    $region16: #{residual_layer.1} parent=1 // pred_region
      _
    $region17: #{residual_layer.1} parent=1 // pred_fallthru
      _
    // Predicated region
    $region18: #{residual_layer.1} parent=1 // pred_check
      _
    $region19: #{residual_layer.1} parent=1 // pred_check_branch
      %20 = sbr.rel (0) target = $region21
    $region20: #{residual_layer.1} parent=1 // pred_region
      _
    $region21: #{residual_layer.1} parent=1 // pred_fallthru
      _
    %v21 = vld [vmem:[%s0] sm:$0xff]
    %v22 = vld [vmem:[%s0 + $0x8] sm:$0xff]
    %v23 = vld [vmem:[%s1] sm:$0xff]
    %v24 = vld [vmem:[%s1 + $0x8] sm:$0xff]
    %v25 = vld [vmem:[%s1 + $0x10] sm:$0xff]
    %v26 = vld [vmem:[%s1 + $0x18] sm:$0xff]
    %v27 = vld [vmem:[%s1 + $0x20] sm:$0xff]
    %v28 = vld [vmem:[%s1 + $0x28] sm:$0xff]
    %v29 = vld [vmem:[%s1 + $0x30] sm:$0xff]
    %v30 = vld [vmem:[%s1 + $0x38] sm:$0xff]
    %v31 = vld [vmem:[%s1 + $0x40] sm:$0xff]
    %v32 = vld [vmem:[%s1 + $0x48] sm:$0xff]
    %v33 = vld [vmem:[%s1 + $0x50] sm:$0xff]
    %v34 = vld [vmem:[%s1 + $0x58] sm:$0xff]
    %v35 = vld [vmem:[%s1 + $0x60] sm:$0xff]
    %v36 = vld [vmem:[%s1 + $0x68] sm:$0xff]
    %v37 = vld [vmem:[%s1 + $0x70] sm:$0xff]
    %v38 = vld [vmem:[%s1 + $0x78] sm:$0xff]
    %v39 = vld [vmem:[%s2] sm:$0x1]
    %v41 = vlaneseq
    %v42 = vshrl.u32 %v41, 7
    %v43 = vsub.s32 0, %v42
    %v44 = vrot.slane %v39, %v43
    %46 = vmatprep.subr.mxu0 0.0
    %47 = vmatpush1.msra.mxu0 %v23
    %48 = vmatprep.subr.mxu0 0.0
    %49 = vmatpush1.msra.mxu0 %v24
    %50 = vmatprep.subr.mxu0 0.0
    %51 = vmatpush1.msra.mxu0 %v25
    %52 = vmatprep.subr.mxu0 0.0
    %53 = vmatpush1.msra.mxu0 %v26
    %54 = vmatprep.subr.mxu0 0.0
    %55 = vmatpush1.msra.mxu0 %v27
    %56 = vmatprep.subr.mxu0 0.0
    %57 = vmatpush1.msra.mxu0 %v28
    %58 = vmatprep.subr.mxu0 0.0
    %59 = vmatpush1.msra.mxu0 %v29
    %60 = vmatprep.subr.mxu0 0.0
    %61 = vmatpush1.msra.mxu0 %v30
    %62 = vmatprep.subr.mxu0 0.0
    %63 = vmatpush1.msra.mxu0 %v31
    %64 = vmatprep.subr.mxu0 0.0
    %65 = vmatpush1.msra.mxu0 %v32
    %66 = vmatprep.subr.mxu0 0.0
    %67 = vmatpush1.msra.mxu0 %v33
    %68 = vmatprep.subr.mxu0 0.0
    %69 = vmatpush1.msra.mxu0 %v34
    %70 = vmatprep.subr.mxu0 0.0
    %71 = vmatpush1.msra.mxu0 %v35
    %72 = vmatprep.subr.mxu0 0.0
    %73 = vmatpush1.msra.mxu0 %v36
    %74 = vmatprep.subr.mxu0 0.0
    %75 = vmatpush1.msra.mxu0 %v37
    %76 = vmatprep.subr.mxu0 0.0
    %77 = vmatpush1.msra.mxu0 %v38
    %78 = vmatprep.subr.mxu0 0.0
    %79 = vmatpush1.msra.mxu0 0.0
    %80 = vmatprep.subr.mxu0 0.0
    %81 = vmatpush1.msra.mxu0 0.0
    %82 = vmatprep.subr.mxu0 0.0
    %83 = vmatpush1.msra.mxu0 0.0
    %84 = vmatprep.subr.mxu0 0.0
    %85 = vmatpush1.msra.mxu0 0.0
    %86 = vmatprep.subr.mxu0 0.0
    %87 = vmatpush1.msra.mxu0 0.0
    %88 = vmatprep.subr.mxu0 0.0
    %89 = vmatpush1.msra.mxu0 0.0
    %90 = vmatprep.subr.mxu0 0.0
    %91 = vmatpush1.msra.mxu0 0.0
    %92 = vmatprep.subr.mxu0 0.0
    %93 = vmatpush1.msra.mxu0 0.0
    %94 = vmatprep.subr.mxu0 0.0
    %95 = vmatpush1.msra.mxu0 0.0
    %96 = vmatprep.subr.mxu0 0.0
    %97 = vmatpush1.msra.mxu0 0.0
    %98 = vmatprep.subr.mxu0 0.0
    %99 = vmatpush1.msra.mxu0 0.0
    %100 = vmatprep.subr.mxu0 0.0
    %101 = vmatpush1.msra.mxu0 0.0
    %102 = vmatprep.subr.mxu0 0.0
    %103 = vmatpush1.msra.mxu0 0.0
    %104 = vmatprep.subr.mxu0 0.0
    %105 = vmatpush1.msra.mxu0 0.0
    %106 = vmatprep.subr.mxu0 0.0
    %107 = vmatpush1.msra.mxu0 0.0
    %108 = vmatprep.subr.mxu0 0.0
    %109 = vmatpush1.msra.mxu0 0.0
    %110 = vmatprep.mubr.f32.mxu0 0.0
    %111 = vmatmul.mubr.f32.gmra.mrb[0].mxu0 %v21
    %v112 = vpop.f32.mrb[0].mxu0
    %v113 = vadd.f32 %v44, %v112
    %v114 = vpop.f32.mrb[0].mxu0
    %115 = vmatprep.mubr.f32.mxu0 0.0
    %116 = vmatmul.mubr.f32.gmra.mrb[0].mxu0 %v22
    %v117 = vpop.f32.mrb[0].mxu0
    %v118 = vadd.f32 %v44, %v117
    %v119 = vpop.f32.mrb[0].mxu0
    %120 = vdwg.mxu0
    %v121 = vand.u32 2147483647, %v113
    %v122 = vand.u32 2147483647, %v118
    %v123 = vsub.f32 0.0, %v121
    %v124 = vsub.f32 0.0, %v122
    %v125 = vmul.f32 %v123, 1.442695
    %v126 = vpow.pop %v125
    %v127 = vmul.f32 %v124, 1.442695
    %v128 = vpow.pop %v127
    %v129 = vadd.f32 %v126, 1.0
    %v130 = vadd.f32 %v128, 1.0
    %v131 = vrcp.pop %v129
    %v132 = vrcp.pop %v130
    %vm133 = vcmp.ge.f32.partialorder %v113, 0.0
    %vm134 = vcmp.ge.f32.partialorder %v118, 0.0
    %v135 = vmul.f32 %v126, %v131
    %v136 = vmul.f32 %v128, %v132
    %v137 = vsel %vm133, %v131, %v135
    %v138 = vsel %vm134, %v132, %v136
    %v139 = vmul.f32 %v113, %v137
    %v140 = vmul.f32 %v118, %v138
    %v141 = vld [vmem:[%s3] sm:$0xff]
    %v142 = vld [vmem:[%s3 + $0x8] sm:$0xff]
    %v143 = vld [vmem:[%s3 + $0x10] sm:$0xff]
    %v144 = vld [vmem:[%s3 + $0x18] sm:$0xff]
    %v145 = vld [vmem:[%s3 + $0x20] sm:$0xff]
    %v146 = vld [vmem:[%s3 + $0x28] sm:$0xff]
    %v147 = vld [vmem:[%s3 + $0x30] sm:$0xff]
    %v148 = vld [vmem:[%s3 + $0x38] sm:$0xff]
    %v149 = vld [vmem:[%s3 + $0x40] sm:$0xff]
    %v150 = vld [vmem:[%s3 + $0x48] sm:$0xff]
    %v151 = vld [vmem:[%s3 + $0x50] sm:$0xff]
    %v152 = vld [vmem:[%s3 + $0x58] sm:$0xff]
    %v153 = vld [vmem:[%s3 + $0x60] sm:$0xff]
    %v154 = vld [vmem:[%s3 + $0x68] sm:$0xff]
    %v155 = vld [vmem:[%s3 + $0x70] sm:$0xff]
    %v156 = vld [vmem:[%s3 + $0x78] sm:$0xff]
    %v157 = vld [vmem:[%s4] sm:$0x1]
    %v159 = vlaneseq
    %v160 = vshrl.u32 %v159, 7
    %v161 = vsub.s32 0, %v160
    %v162 = vrot.slane %v157, %v161
    %164 = vmatprep.subr.mxu0 0.0
    %165 = vmatpush1.msra.mxu0 %v141
    %166 = vmatprep.subr.mxu0 0.0
    %167 = vmatpush1.msra.mxu0 %v142
    %168 = vmatprep.subr.mxu0 0.0
    %169 = vmatpush1.msra.mxu0 %v143
    %170 = vmatprep.subr.mxu0 0.0
    %171 = vmatpush1.msra.mxu0 %v144
    %172 = vmatprep.subr.mxu0 0.0
    %173 = vmatpush1.msra.mxu0 %v145
    %174 = vmatprep.subr.mxu0 0.0
    %175 = vmatpush1.msra.mxu0 %v146
    %176 = vmatprep.subr.mxu0 0.0
    %177 = vmatpush1.msra.mxu0 %v147
    %178 = vmatprep.subr.mxu0 0.0
    %179 = vmatpush1.msra.mxu0 %v148
    %180 = vmatprep.subr.mxu0 0.0
    %181 = vmatpush1.msra.mxu0 %v149
    %182 = vmatprep.subr.mxu0 0.0
    %183 = vmatpush1.msra.mxu0 %v150
    %184 = vmatprep.subr.mxu0 0.0
    %185 = vmatpush1.msra.mxu0 %v151
    %186 = vmatprep.subr.mxu0 0.0
    %187 = vmatpush1.msra.mxu0 %v152
    %188 = vmatprep.subr.mxu0 0.0
    %189 = vmatpush1.msra.mxu0 %v153
    %190 = vmatprep.subr.mxu0 0.0
    %191 = vmatpush1.msra.mxu0 %v154
    %192 = vmatprep.subr.mxu0 0.0
    %193 = vmatpush1.msra.mxu0 %v155
    %194 = vmatprep.subr.mxu0 0.0
    %195 = vmatpush1.msra.mxu0 %v156
    %196 = vmatprep.subr.mxu0 0.0
    %197 = vmatpush1.msra.mxu0 0.0
    %198 = vmatprep.subr.mxu0 0.0
    %199 = vmatpush1.msra.mxu0 0.0
    %200 = vmatprep.subr.mxu0 0.0
    %201 = vmatpush1.msra.mxu0 0.0
    %202 = vmatprep.subr.mxu0 0.0
    %203 = vmatpush1.msra.mxu0 0.0
    %204 = vmatprep.subr.mxu0 0.0
    %205 = vmatpush1.msra.mxu0 0.0
    %206 = vmatprep.subr.mxu0 0.0
    %207 = vmatpush1.msra.mxu0 0.0
    %208 = vmatprep.subr.mxu0 0.0
    %209 = vmatpush1.msra.mxu0 0.0
    %210 = vmatprep.subr.mxu0 0.0
    %211 = vmatpush1.msra.mxu0 0.0
    %212 = vmatprep.subr.mxu0 0.0
    %213 = vmatpush1.msra.mxu0 0.0
    %214 = vmatprep.subr.mxu0 0.0
    %215 = vmatpush1.msra.mxu0 0.0
    %216 = vmatprep.subr.mxu0 0.0
    %217 = vmatpush1.msra.mxu0 0.0
    %218 = vmatprep.subr.mxu0 0.0
    %219 = vmatpush1.msra.mxu0 0.0
    %220 = vmatprep.subr.mxu0 0.0
    %221 = vmatpush1.msra.mxu0 0.0
    %222 = vmatprep.subr.mxu0 0.0
    %223 = vmatpush1.msra.mxu0 0.0
    %224 = vmatprep.subr.mxu0 0.0
    %225 = vmatpush1.msra.mxu0 0.0
    %226 = vmatprep.subr.mxu0 0.0
    %227 = vmatpush1.msra.mxu0 0.0
    %228 = vmatprep.mubr.f32.mxu0 0.0
    %229 = vmatmul.mubr.f32.gmra.mrb[0].mxu0 %v139
    %v230 = vpop.f32.mrb[0].mxu0
    %v231 = vadd.f32 %v162, %v230
    %v232 = vpop.f32.mrb[0].mxu0
    %233 = vmatprep.mubr.f32.mxu0 0.0
    %234 = vmatmul.mubr.f32.gmra.mrb[0].mxu0 %v140
    %v235 = vpop.f32.mrb[0].mxu0
    %v236 = vadd.f32 %v162, %v235
    %v237 = vpop.f32.mrb[0].mxu0
    %238 = vdwg.mxu0
    %v239 = vand.u32 2147483647, %v231
    %v240 = vand.u32 2147483647, %v236
    %v241 = vsub.f32 0.0, %v239
    %v242 = vsub.f32 0.0, %v240
    %v243 = vmul.f32 %v241, 1.442695
    %v244 = vpow.pop %v243
    %v245 = vmul.f32 %v242, 1.442695
    %v246 = vpow.pop %v245
    %v247 = vadd.f32 %v244, 1.0
    %v248 = vadd.f32 %v246, 1.0
    %v249 = vrcp.pop %v247
    %v250 = vrcp.pop %v248
    %vm251 = vcmp.ge.f32.partialorder %v231, 0.0
    %vm252 = vcmp.ge.f32.partialorder %v236, 0.0
    %v253 = vmul.f32 %v244, %v249
    %v254 = vmul.f32 %v246, %v250
    %v255 = vsel %vm251, %v249, %v253
    %v256 = vsel %vm252, %v250, %v254
    %v257 = vmul.f32 %v231, %v255
    %v258 = vmul.f32 %v236, %v256
    %v259 = vadd.f32 %v21, %v257
    %v260 = vadd.f32 %v22, %v258
    %261 = vst [vmem:[#allocation2] sm:$0xff] %v259
    %262 = vst [vmem:[#allocation2 + $0x8] sm:$0xff] %v260
    // Predicated region
    $region22: #{residual_layer.1} parent=1 // pred_check
      _
    $region23: #{residual_layer.1} parent=1 // pred_check_branch
      %264 = sbr.rel (0) target = $region25
    $region24: #{residual_layer.1} parent=1 // pred_region
      %s266 = ssub.s32 256, 256
      %267 = vsyncadd [#allocation3], %s266
      %s268 = sshll.u32 [#allocation2], 4
      %s269 = int_to_ptr.vmem [resolvable:$true] %s268
      %274 = dma.vmem_to_hbm [thread:$0]  %s269, 256, %s5, [#allocation3], 128, 128, 8
    $region25: #{residual_layer.1} parent=1 // pred_fallthru
      _
    // Predicated region
    $region26: #{residual_layer.1} parent=1 // pred_check
      _
    $region27: #{residual_layer.1} parent=1 // pred_check_branch
      %276 = sbr.rel (0) target = $region29
    $region28: #{residual_layer.1} parent=1 // pred_region
      %277 = dma.done [#allocation3], 256
    $region29: #{residual_layer.1} parent=1 // pred_fallthru
      _
    %278 = vsyncpa [#allocation3], 1

</llo_original>
